<compile_context>
chip_gen: v7x
topology: tpu7x:2x2x1
jax: 0.10.0
libtpu: 0.0.40
codegen_flags: <defaults>
</compile_context>

<pallas_src>
import jax
import jax.numpy as jnp
from jax.experimental import pallas as pl
from jax.experimental.pallas import tpu as pltpu


# ------------------------------ Pallas kernel ------------------------------- #

def _make_ets_decoder_kernel(n_layers):
    """Kernel factory: n_layers is small and static, so the layer loop is unrolled."""

    def kernel(*refs):
        d_ref = refs[0]                                  # [L, t, D]  f32 (cumulative damping)
        g_refs = refs[1:1 + n_layers]                    # L x [1, 1, D]  bf16 (last growth token)
        s_refs = refs[1 + n_layers:1 + 2 * n_layers]     # L x [1, t, D]  bf16 (season tail)
        w_ref = refs[1 + 2 * n_layers]                   # [D, C] f32 (pre-transposed)
        b_ref = refs[2 + 2 * n_layers]                   # [1, C] f32
        go_ref = refs[3 + 2 * n_layers]                  # [1, t, C] f32
        so_ref = refs[4 + 2 * n_layers]                  # [1, t, C] f32

        w = w_ref[...]
        bias = b_ref[...]

        # Layer sum (static unroll); every op stays 2-D, accumulation in f32.
        gh = d_ref[0] * g_refs[0][0].astype(jnp.float32)          # [t, D]
        sh = s_refs[0][0].astype(jnp.float32)                     # [t, D]
        for l in range(1, n_layers):
            gh = gh + d_ref[l] * g_refs[l][0].astype(jnp.float32)
            sh = sh + s_refs[l][0].astype(jnp.float32)

        go = jnp.dot(gh, w, preferred_element_type=jnp.float32) + bias
        so = jnp.dot(sh, w, preferred_element_type=jnp.float32) + bias
        go_ref[...] = go[None].astype(go_ref.dtype)
        so_ref[...] = so[None].astype(so_ref.dtype)

    return kernel


def _pick_t_tile(T, L, D, C, budget_bytes):
    """Largest multiple-of-8 row tile (<= T, <= 2048) whose double-buffered per-step
    VMEM footprint fits the budget.  T < 8 uses the full dim (always legal).  A
    partial last tile (T not divisible by t_tile) is fine -- Pallas masks it."""
    if T <= 8:
        return T

    def step_bytes(tt):
        damp = L * tt * D * 4          # f32 damping block
        seas = L * tt * D * 2          # bf16 season blocks
        outs = 2 * tt * C * 4          # two f32 output blocks
        grow = L * D * 2               # bf16 growth tokens (tiny)
        wgt = D * C * 4 + C * 4        # resident weight + bias
        return 2 * (damp + seas + outs + grow) + 2 * wgt   # double-buffered

    tt = min(T if T % 8 == 0 else T - (T % 8), 2048)
    tt = max(tt, 8)
    while tt > 8 and step_bytes(tt) > budget_bytes:
        tt -= 8
    return tt


def _ets_decoder_pallas(d_exp, g_last, s_tail, w, b):
    L, T, D = d_exp.shape
    B = g_last[0].shape[0]
    C = w.shape[1]

    t_tile = _pick_t_tile(T, L, D, C, budget_bytes=24 * 1024 * 1024)
    nt = pl.cdiv(T, t_tile)

    # Grid order (nt, B): batch is the innermost axis, so the damping / weight /
    # bias block indices are constant across consecutive steps -> no re-DMA.
    damp_spec = pl.BlockSpec((L, t_tile, D), lambda ti, bi: (0, ti, 0))
    g_specs = [pl.BlockSpec((1, 1, D), lambda ti, bi: (bi, 0, 0)) for _ in range(L)]
    s_specs = [pl.BlockSpec((1, t_tile, D), lambda ti, bi: (bi, ti, 0)) for _ in range(L)]
    w_spec = pl.BlockSpec((D, C), lambda ti, bi: (0, 0))
    b_spec = pl.BlockSpec((1, C), lambda ti, bi: (0, 0))
    out_spec = pl.BlockSpec((1, t_tile, C), lambda ti, bi: (bi, ti, 0))

    return pl.pallas_call(
        _make_ets_decoder_kernel(L),
        out_shape=(
            jax.ShapeDtypeStruct((B, T, C), jnp.float32),
            jax.ShapeDtypeStruct((B, T, C), jnp.float32),
        ),
        grid=(nt, B),
        in_specs=[damp_spec, *g_specs, *s_specs, w_spec, b_spec],
        out_specs=[out_spec, out_spec],
        compiler_params=pltpu.CompilerParams(
            dimension_semantics=("parallel", "parallel"),
            vmem_limit_bytes=48 * 1024 * 1024,   # headroom under v7x's 64 MiB physical
        ),
    )(d_exp, *g_last, *s_tail, w, b)


# ------------------------------ forward (glue) ------------------------------ #

def init_params(key, n_layers, d_model, nhead, c_out):
    ks = jax.random.split(key, 3)
    return {
        # DampingLayer raw parameter per layer: [1, nhead]
        "damping": 0.5 * jax.random.normal(ks[0], (n_layers, 1, nhead), jnp.float32),
        # nn.Linear stores weight as [c_out, d_model]; keep it pre-transposed
        # [d_model, c_out] so the kernel-resident weight never needs re-layout.
        "pred_w": 0.1 * jax.random.normal(ks[1], (d_model, c_out), jnp.float32),
        "pred_b": 0.1 * jax.random.normal(ks[2], (1, c_out), jnp.float32),
    }


def ets_decoder_forward(growths, seasons, params, pred_len, nhead):
    B, _, d_model = growths[0].shape
    d_head = d_model // nhead

    # Tiny parameter-only preprocessing: cumulative damping factors per layer,
    # expanded head-major to d_model.  Stays f32 (fetched once per T-tile).
    powers = jnp.arange(1, pred_len + 1, dtype=jnp.float32)[None, :, None]   # [1, T, 1]
    fac = jax.nn.sigmoid(params["damping"])                                  # [L, 1, H]
    fac = jnp.cumsum(fac ** powers, axis=1)                                  # [L, T, H]
    d_exp = jnp.repeat(fac, d_head, axis=-1)                                 # [L, T, D]

    # Per-layer streamed inputs (no stacked [B, L, T, D] materialization).
    # The tail / last-token slice is fused with the bf16 boundary cast.
    g_last = [g[:, -1:, :].astype(jnp.bfloat16) for g in growths]            # L x [B, 1, D]
    s_tail = [s[:, -pred_len:, :].astype(jnp.bfloat16) for s in seasons]     # L x [B, T, D]

    return _ets_decoder_pallas(d_exp, g_last, s_tail, params["pred_w"], params["pred_b"])


# ---------------------------- pure-JAX reference ---------------------------- #

def ets_decoder_ref(growths, seasons, params, pred_len, nhead):
    d_model = growths[0].shape[-1]
    d_head = d_model // nhead
    powers = jnp.arange(1, pred_len + 1, dtype=jnp.float32)[:, None]
    growth_repr = 0.0
    season_repr = 0.0
    for l in range(len(growths)):
        df = jax.nn.sigmoid(params["damping"][l])             # [1, H]
        fac = jnp.cumsum(df ** powers, axis=0)                # [T, H]
        fac = jnp.repeat(fac, d_head, axis=-1)                # [T, D]
        g_last = growths[l][:, -1, :]                         # [B, D]
        growth_repr = growth_repr + g_last[:, None, :] * fac[None]
        season_repr = season_repr + seasons[l][:, -pred_len:, :]
    w, b = params["pred_w"], params["pred_b"]
    return growth_repr @ w + b, season_repr @ w + b


# ----------------------------------- main ----------------------------------- #

if __name__ == "__main__":
    B, seq_len, pred_len = 2, 16, 8
    d_model, nhead, c_out, n_layers = 32, 4, 4, 2

    key = jax.random.PRNGKey(0)
    keys = jax.random.split(key, 1 + 2 * n_layers)
    params = init_params(keys[0], n_layers, d_model, nhead, c_out)
    growths = [
        jax.random.normal(keys[1 + 2 * i], (B, seq_len + 1, d_model), jnp.float32)
        for i in range(n_layers)
    ]
    seasons = [
        jax.random.normal(keys[2 + 2 * i], (B, seq_len, d_model), jnp.float32)
        for i in range(n_layers)
    ]

    g_out, s_out = ets_decoder_forward(growths, seasons, params, pred_len, nhead)
    g_out = jax.block_until_ready(g_out)
    s_out = jax.block_until_ready(s_out)

    g_ref, s_ref = ets_decoder_ref(growths, seasons, params, pred_len, nhead)

    assert g_out.shape == (B, pred_len, c_out), g_out.shape
    assert s_out.shape == (B, pred_len, c_out), s_out.shape
    assert bool(jnp.all(jnp.isfinite(g_out))) and bool(jnp.all(jnp.isfinite(s_out)))
    # bf16 streaming of growth/season inputs -> loosened tolerance vs the f32 reference.
    assert bool(jnp.allclose(g_out, g_ref, rtol=3e-2, atol=3e-2))
    assert bool(jnp.allclose(s_out, s_ref, rtol=3e-2, atol=3e-2))
    print("KERNEL_OK")
</pallas_src>

<mosaic_0001>
module attributes {stable_mosaic.version = 11 : i64} {
  func.func @kernel(%arg0: i32, %arg1: i32, %arg2: memref<2x8x32xf32, #tpu.memory_space<vmem>>, %arg3: memref<1x1x32xbf16, #tpu.memory_space<vmem>>, %arg4: memref<1x1x32xbf16, #tpu.memory_space<vmem>>, %arg5: memref<1x8x32xbf16, #tpu.memory_space<vmem>>, %arg6: memref<1x8x32xbf16, #tpu.memory_space<vmem>>, %arg7: memref<32x4xf32, #tpu.memory_space<vmem>>, %arg8: memref<1x4xf32, #tpu.memory_space<vmem>>, %arg9: memref<1x8x4xf32, #tpu.memory_space<vmem>>, %arg10: memref<1x8x4xf32, #tpu.memory_space<vmem>>) attributes {dimension_semantics = [#tpu.dimension_semantics<parallel>, #tpu.dimension_semantics<parallel>], iteration_bounds = array<i64: 1, 2>, scalar_prefetch = 0 : i64, scratch_operands = 0 : i64, tpu.core_type = #tpu.core_type<tc>, window_params = [{transform_indices = @transform_0, window_bounds = array<i64: 2, 8, 32>}, {transform_indices = @transform_1, window_bounds = array<i64: 1, 1, 32>}, {transform_indices = @transform_2, window_bounds = array<i64: 1, 1, 32>}, {transform_indices = @transform_3, window_bounds = array<i64: 1, 8, 32>}, {transform_indices = @transform_4, window_bounds = array<i64: 1, 8, 32>}, {pipeline_mode = #tpu.pipeline_mode<synchronous>, transform_indices = @transform_5, window_bounds = array<i64: 32, 4>}, {pipeline_mode = #tpu.pipeline_mode<synchronous>, transform_indices = @transform_6, window_bounds = array<i64: 1, 4>}, {transform_indices = @transform_7, window_bounds = array<i64: 1, 8, 4>}, {transform_indices = @transform_8, window_bounds = array<i64: 1, 8, 4>}]} {
    %c0 = arith.constant 0 : index
    %c0_0 = arith.constant 0 : index
    %0 = vector.load %arg7[%c0, %c0_0] : memref<32x4xf32, #tpu.memory_space<vmem>>, vector<32x4xf32>
    %c0_1 = arith.constant 0 : index
    %c0_2 = arith.constant 0 : index
    %1 = vector.load %arg8[%c0_1, %c0_2] : memref<1x4xf32, #tpu.memory_space<vmem>>, vector<1x4xf32>
    %c0_3 = arith.constant 0 : index
    %c0_4 = arith.constant 0 : index
    %c0_5 = arith.constant 0 : index
    %2 = vector.load %arg2[%c0_3, %c0_4, %c0_5] : memref<2x8x32xf32, #tpu.memory_space<vmem>>, vector<1x8x32xf32>
    %3 = vector.shape_cast %2 : vector<1x8x32xf32> to vector<8x32xf32>
    %c0_6 = arith.constant 0 : index
    %c0_7 = arith.constant 0 : index
    %c0_8 = arith.constant 0 : index
    %4 = vector.load %arg3[%c0_6, %c0_7, %c0_8] : memref<1x1x32xbf16, #tpu.memory_space<vmem>>, vector<1x1x32xbf16>
    %5 = vector.shape_cast %4 : vector<1x1x32xbf16> to vector<1x32xbf16>
    %6 = arith.extf %5 : vector<1x32xbf16> to vector<1x32xf32>
    %7 = vector.broadcast %6 : vector<1x32xf32> to vector<8x32xf32>
    %8 = arith.mulf %3, %7 : vector<8x32xf32>
    %c0_9 = arith.constant 0 : index
    %c0_10 = arith.constant 0 : index
    %c0_11 = arith.constant 0 : index
    %9 = vector.load %arg5[%c0_9, %c0_10, %c0_11] : memref<1x8x32xbf16, #tpu.memory_space<vmem>>, vector<1x8x32xbf16>
    %10 = vector.shape_cast %9 : vector<1x8x32xbf16> to vector<8x32xbf16>
    %11 = arith.extf %10 : vector<8x32xbf16> to vector<8x32xf32>
    %c1 = arith.constant 1 : index
    %c0_12 = arith.constant 0 : index
    %c0_13 = arith.constant 0 : index
    %12 = vector.load %arg2[%c1, %c0_12, %c0_13] : memref<2x8x32xf32, #tpu.memory_space<vmem>>, vector<1x8x32xf32>
    %13 = vector.shape_cast %12 : vector<1x8x32xf32> to vector<8x32xf32>
    %c0_14 = arith.constant 0 : index
    %c0_15 = arith.constant 0 : index
    %c0_16 = arith.constant 0 : index
    %14 = vector.load %arg4[%c0_14, %c0_15, %c0_16] : memref<1x1x32xbf16, #tpu.memory_space<vmem>>, vector<1x1x32xbf16>
    %15 = vector.shape_cast %14 : vector<1x1x32xbf16> to vector<1x32xbf16>
    %16 = arith.extf %15 : vector<1x32xbf16> to vector<1x32xf32>
    %17 = vector.broadcast %16 : vector<1x32xf32> to vector<8x32xf32>
    %18 = arith.mulf %13, %17 : vector<8x32xf32>
    %19 = arith.addf %8, %18 : vector<8x32xf32>
    %c0_17 = arith.constant 0 : index
    %c0_18 = arith.constant 0 : index
    %c0_19 = arith.constant 0 : index
    %20 = vector.load %arg6[%c0_17, %c0_18, %c0_19] : memref<1x8x32xbf16, #tpu.memory_space<vmem>>, vector<1x8x32xbf16>
    %21 = vector.shape_cast %20 : vector<1x8x32xbf16> to vector<8x32xbf16>
    %22 = arith.extf %21 : vector<8x32xbf16> to vector<8x32xf32>
    %23 = arith.addf %11, %22 : vector<8x32xf32>
    %cst = arith.constant dense<0.000000e+00> : vector<8x4xf32>
    %24 = tpu.matmul %19, %0, %cst {dimension_numbers = #tpu.dot_dimension_numbers<[1], [0], [0], [1], [0, 0, 1, 1], [], []>} : vector<8x32xf32>, vector<32x4xf32>, vector<8x4xf32> -> vector<8x4xf32>
    %25 = vector.broadcast %1 : vector<1x4xf32> to vector<8x4xf32>
    %26 = arith.addf %24, %25 : vector<8x4xf32>
    %cst_20 = arith.constant dense<0.000000e+00> : vector<8x4xf32>
    %27 = tpu.matmul %23, %0, %cst_20 {dimension_numbers = #tpu.dot_dimension_numbers<[1], [0], [0], [1], [0, 0, 1, 1], [], []>} : vector<8x32xf32>, vector<32x4xf32>, vector<8x4xf32> -> vector<8x4xf32>
    %28 = vector.broadcast %1 : vector<1x4xf32> to vector<8x4xf32>
    %29 = arith.addf %27, %28 : vector<8x4xf32>
    %30 = vector.shape_cast %26 : vector<8x4xf32> to vector<1x8x4xf32>
    %c0_21 = arith.constant 0 : index
    %c0_22 = arith.constant 0 : index
    %c0_23 = arith.constant 0 : index
    %31 = vector.load %arg9[%c0_21, %c0_22, %c0_23] : memref<1x8x4xf32, #tpu.memory_space<vmem>>, vector<1x8x4xf32>
    tpu.vector_store %arg9[%c0_21, %c0_22, %c0_23], %30 {strides = array<i32>} : memref<1x8x4xf32, #tpu.memory_space<vmem>>, vector<1x8x4xf32>,
    %32 = vector.shape_cast %29 : vector<8x4xf32> to vector<1x8x4xf32>
    %c0_24 = arith.constant 0 : index
    %c0_25 = arith.constant 0 : index
    %c0_26 = arith.constant 0 : index
    %33 = vector.load %arg10[%c0_24, %c0_25, %c0_26] : memref<1x8x4xf32, #tpu.memory_space<vmem>>, vector<1x8x4xf32>
    tpu.vector_store %arg10[%c0_24, %c0_25, %c0_26], %32 {strides = array<i32>} : memref<1x8x4xf32, #tpu.memory_space<vmem>>, vector<1x8x4xf32>,
    return
  }
  func.func @transform_0(%arg0: i32, %arg1: i32) -> (i32, i32, i32) {
    %c0_i32 = arith.constant 0 : i32
    %c0_i32_0 = arith.constant 0 : i32
    %c0_i32_1 = arith.constant 0 : i32
    return %c0_i32, %arg0, %c0_i32_0 : i32, i32, i32
  }
  func.func @transform_1(%arg0: i32, %arg1: i32) -> (i32, i32, i32) {
    %c0_i32 = arith.constant 0 : i32
    %c0_i32_0 = arith.constant 0 : i32
    %c0_i32_1 = arith.constant 0 : i32
    return %arg1, %c0_i32, %c0_i32_0 : i32, i32, i32
  }
  func.func @transform_2(%arg0: i32, %arg1: i32) -> (i32, i32, i32) {
    %c0_i32 = arith.constant 0 : i32
    %c0_i32_0 = arith.constant 0 : i32
    %c0_i32_1 = arith.constant 0 : i32
    return %arg1, %c0_i32, %c0_i32_0 : i32, i32, i32
  }
  func.func @transform_3(%arg0: i32, %arg1: i32) -> (i32, i32, i32) {
    %c0_i32 = arith.constant 0 : i32
    %c0_i32_0 = arith.constant 0 : i32
    return %arg1, %arg0, %c0_i32 : i32, i32, i32
  }
  func.func @transform_4(%arg0: i32, %arg1: i32) -> (i32, i32, i32) {
    %c0_i32 = arith.constant 0 : i32
    %c0_i32_0 = arith.constant 0 : i32
    return %arg1, %arg0, %c0_i32 : i32, i32, i32
  }
  func.func @transform_5(%arg0: i32, %arg1: i32) -> (i32, i32) {
    %c0_i32 = arith.constant 0 : i32
    %c0_i32_0 = arith.constant 0 : i32
    %c0_i32_1 = arith.constant 0 : i32
    return %c0_i32, %c0_i32_0 : i32, i32
  }
  func.func @transform_6(%arg0: i32, %arg1: i32) -> (i32, i32) {
    %c0_i32 = arith.constant 0 : i32
    %c0_i32_0 = arith.constant 0 : i32
    %c0_i32_1 = arith.constant 0 : i32
    return %c0_i32, %c0_i32_0 : i32, i32
  }
  func.func @transform_7(%arg0: i32, %arg1: i32) -> (i32, i32, i32) {
    %c0_i32 = arith.constant 0 : i32
    %c0_i32_0 = arith.constant 0 : i32
    return %arg1, %arg0, %c0_i32 : i32, i32, i32
  }
  func.func @transform_8(%arg0: i32, %arg1: i32) -> (i32, i32, i32) {
    %c0_i32 = arith.constant 0 : i32
    %c0_i32_0 = arith.constant 0 : i32
    return %arg1, %arg0, %c0_i32 : i32, i32, i32
  }
}

</mosaic_0001>

<llo_original>
// kernel: tpu_custom_call.1
$region0: #{tpu_custom_call.1}
  #allocation0 [shape = 'u32[]', space=smem, size = 0x4, offset = 0x4, fixed_abs, tag = 'smem constant byte address 0x4 - core index']
  #allocation1 [shape = 'u32[144,128]{1,0:T(1,128)}', space=vmem, size = 0x12000, scoped, tag = 'internal scratch']
  %s0 = inlined_call_operand.vmem [shape: f32[2,8,32], index: 0, kind: input, shape index: {}]
  %s1 = inlined_call_operand.vmem [shape: bf16[2,1,32], index: 1, kind: input, shape index: {}]
  %s2 = inlined_call_operand.vmem [shape: bf16[2,1,32], index: 2, kind: input, shape index: {}]
  %s3 = inlined_call_operand.vmem [shape: bf16[2,8,32], index: 3, kind: input, shape index: {}]
  %s4 = inlined_call_operand.vmem [shape: bf16[2,8,32], index: 4, kind: input, shape index: {}]
  %s5 = inlined_call_operand.vmem [shape: f32[32,4], index: 5, kind: input, shape index: {}]
  %s6 = inlined_call_operand.vmem [shape: f32[1,4], index: 6, kind: input, shape index: {}]
  %s7 = inlined_call_operand.vmem [shape: f32[2,8,4], index: 7, kind: output, shape index: {0}]
  %s8 = inlined_call_operand.vmem [shape: f32[2,8,4], index: 8, kind: output, shape index: {1}]
  %9 = xla_tuple %s7, %s8
  %s10 = sld [smem:[#allocation0]]
  $region69: #{tpu_custom_call.1} parent=0
    _
  %s12 = ssub.s32 1, %s10
  %s13 = scalar_select 0, %s12, %s10
  loop: start=0, step=1, limit=4
  $region2: #{tpu_custom_call.1} parent=0 // loop_pre_header
    _
  $region3: #{tpu_custom_call.1} parent=0 // loop_header
    %s15 = sphi 0, %s19
    %p16 = scmp.ge.s32.totalorder %s15, 4
    %s22 = sphi 0, %s34
    %s23 = sphi 0, %s30
    %s24 = sphi 0, %s22
    %s25 = sphi 0, %s23
    %s26 = sphi 0, %s24
    %s27 = sphi 0, %s25
    %s37 = sphi 0, %s39
    %s40 = sphi 0, %s37
    %s41 = sphi 0, %s40
    %s57 = sphi 0, %s41
    %s63 = sphi 0, %s65
    %s66 = sphi 0, %s63
    %s67 = sphi 0, %s66
    %s83 = sphi 0, %s67
    %s89 = sphi 0, %s91
    %s92 = sphi 0, %s89
    %s93 = sphi 0, %s92
    %s109 = sphi 0, %s93
    %s117 = sphi 0, %s119
    %s120 = sphi 0, %s117
    %s121 = sphi 0, %s120
    %s137 = sphi 0, %s121
    %s145 = sphi 0, %s147
    %s148 = sphi 0, %s145
    %s149 = sphi 0, %s148
    %s165 = sphi 0, %s149
    %s169 = sphi 0, %s169
    %s171 = sphi 0, %s169
    %s172 = sphi 0, %s171
    %s186 = sphi 0, %s172
    %s190 = sphi 0, %s190
    %s192 = sphi 0, %s190
    %s193 = sphi 0, %s192
    %s207 = sphi 0, %s193
    %s215 = sphi 0, %s217
    %s218 = sphi 0, %s215
    %s219 = sphi 0, %s218
    %s235 = sphi 0, %s219
    %s243 = sphi 0, %s245
    %s246 = sphi 0, %s243
    %s247 = sphi 0, %s246
    %s263 = sphi 0, %s247
  $region4: #{tpu_custom_call.1} parent=0 // loop_header_branch
    %18 = sbr.rel (%p16) target = $region8
  $region5: #{tpu_custom_call.1} parent=0 // loop_body
    %s20 = ssub.s32 %s15, 1
    %s21 = ssub.s32 %s15, 2
    %s28 = sadd.s32 1, %s23
    %p29 = scmp.ge.s32.totalorder %s28, 2
    %s30 = scalar_select %p29, 0, %s28
    %s31 = sadd.s32 1, %s22
    %s32 = scalar_select %p29, %s31, %s22
    %p33 = scmp.ge.s32.totalorder %s32, 1
    %s34 = scalar_select %p33, 0, %s32
    %s35 = ssub.s32 %s22, %s34
    %p36 = scmp.eq.s32.totalorder %s35, 0
    %s38 = sadd.s32 %s37, 1
    %s39 = scalar_select %p36, %s37, %s38
    %p42 = pneg %p36
    %p43 = scmp.eq.s32.totalorder %s15, 1
    %p44 = por %p42, %p43
    %p45 = scmp.ne.s32.totalorder %s37, %s40
    %p46 = scmp.eq.s32.totalorder %s15, 0
    %p47 = por %p45, %p46
    %p48 = scmp.ne.s32.totalorder %s37, %s40
    %p49 = scmp.eq.s32.totalorder %s20, 1
    %p50 = por %p48, %p49
    %p51 = scmp.ne.s32.totalorder %s40, %s41
    %p52 = scmp.eq.s32.totalorder %s20, 0
    %p53 = por %p51, %p52
    %p54 = scmp.ne.s32.totalorder %s40, %s41
    %p55 = scmp.eq.s32.totalorder %s21, 1
    %p56 = por %p54, %p55
    %p58 = scmp.ne.s32.totalorder %s41, %s57
    %p59 = scmp.eq.s32.totalorder %s21, 0
    %p60 = por %p58, %p59
    %s61 = ssub.s32 %s23, %s30
    %p62 = scmp.eq.s32.totalorder %s61, 0
    %s64 = sadd.s32 %s63, 1
    %s65 = scalar_select %p62, %s63, %s64
    %p68 = pneg %p62
    %p69 = scmp.eq.s32.totalorder %s15, 1
    %p70 = por %p68, %p69
    %p71 = scmp.ne.s32.totalorder %s63, %s66
    %p72 = scmp.eq.s32.totalorder %s15, 0
    %p73 = por %p71, %p72
    %p74 = scmp.ne.s32.totalorder %s63, %s66
    %p75 = scmp.eq.s32.totalorder %s20, 1
    %p76 = por %p74, %p75
    %p77 = scmp.ne.s32.totalorder %s66, %s67
    %p78 = scmp.eq.s32.totalorder %s20, 0
    %p79 = por %p77, %p78
    %p80 = scmp.ne.s32.totalorder %s66, %s67
    %p81 = scmp.eq.s32.totalorder %s21, 1
    %p82 = por %p80, %p81
    %p84 = scmp.ne.s32.totalorder %s67, %s83
    %p85 = scmp.eq.s32.totalorder %s21, 0
    %p86 = por %p84, %p85
    %s87 = ssub.s32 %s23, %s30
    %p88 = scmp.eq.s32.totalorder %s87, 0
    %s90 = sadd.s32 %s89, 1
    %s91 = scalar_select %p88, %s89, %s90
    %p94 = pneg %p88
    %p95 = scmp.eq.s32.totalorder %s15, 1
    %p96 = por %p94, %p95
    %p97 = scmp.ne.s32.totalorder %s89, %s92
    %p98 = scmp.eq.s32.totalorder %s15, 0
    %p99 = por %p97, %p98
    %p100 = scmp.ne.s32.totalorder %s89, %s92
    %p101 = scmp.eq.s32.totalorder %s20, 1
    %p102 = por %p100, %p101
    %p103 = scmp.ne.s32.totalorder %s92, %s93
    %p104 = scmp.eq.s32.totalorder %s20, 0
    %p105 = por %p103, %p104
    %p106 = scmp.ne.s32.totalorder %s92, %s93
    %p107 = scmp.eq.s32.totalorder %s21, 1
    %p108 = por %p106, %p107
    %p110 = scmp.ne.s32.totalorder %s93, %s109
    %p111 = scmp.eq.s32.totalorder %s21, 0
    %p112 = por %p110, %p111
    %s113 = ssub.s32 %s23, %s30
    %s114 = ssub.s32 %s22, %s34
    %s115 = sor.u32 %s113, %s114
    %p116 = scmp.eq.s32.totalorder %s115, 0
    %s118 = sadd.s32 %s117, 1
    %s119 = scalar_select %p116, %s117, %s118
    %p122 = pneg %p116
    %p123 = scmp.eq.s32.totalorder %s15, 1
    %p124 = por %p122, %p123
    %p125 = scmp.ne.s32.totalorder %s117, %s120
    %p126 = scmp.eq.s32.totalorder %s15, 0
    %p127 = por %p125, %p126
    %p128 = scmp.ne.s32.totalorder %s117, %s120
    %p129 = scmp.eq.s32.totalorder %s20, 1
    %p130 = por %p128, %p129
    %p131 = scmp.ne.s32.totalorder %s120, %s121
    %p132 = scmp.eq.s32.totalorder %s20, 0
    %p133 = por %p131, %p132
    %p134 = scmp.ne.s32.totalorder %s120, %s121
    %p135 = scmp.eq.s32.totalorder %s21, 1
    %p136 = por %p134, %p135
    %p138 = scmp.ne.s32.totalorder %s121, %s137
    %p139 = scmp.eq.s32.totalorder %s21, 0
    %p140 = por %p138, %p139
    %s141 = ssub.s32 %s23, %s30
    %s142 = ssub.s32 %s22, %s34
    %s143 = sor.u32 %s141, %s142
    %p144 = scmp.eq.s32.totalorder %s143, 0
    %s146 = sadd.s32 %s145, 1
    %s147 = scalar_select %p144, %s145, %s146
    %p150 = pneg %p144
    %p151 = scmp.eq.s32.totalorder %s15, 1
    %p152 = por %p150, %p151
    %p153 = scmp.ne.s32.totalorder %s145, %s148
    %p154 = scmp.eq.s32.totalorder %s15, 0
    %p155 = por %p153, %p154
    %p156 = scmp.ne.s32.totalorder %s145, %s148
    %p157 = scmp.eq.s32.totalorder %s20, 1
    %p158 = por %p156, %p157
    %p159 = scmp.ne.s32.totalorder %s148, %s149
    %p160 = scmp.eq.s32.totalorder %s20, 0
    %p161 = por %p159, %p160
    %p162 = scmp.ne.s32.totalorder %s148, %s149
    %p163 = scmp.eq.s32.totalorder %s21, 1
    %p164 = por %p162, %p163
    %p166 = scmp.ne.s32.totalorder %s149, %s165
    %p167 = scmp.eq.s32.totalorder %s21, 0
    %p168 = por %p166, %p167
    %s170 = sadd.s32 %s169, 1
    %p173 = scmp.eq.s32.totalorder %s15, 1
    %p174 = scmp.ne.s32.totalorder %s169, %s171
    %p175 = scmp.eq.s32.totalorder %s15, 0
    %p176 = por %p174, %p175
    %p177 = scmp.ne.s32.totalorder %s169, %s171
    %p178 = scmp.eq.s32.totalorder %s20, 1
    %p179 = por %p177, %p178
    %p180 = scmp.ne.s32.totalorder %s171, %s172
    %p181 = scmp.eq.s32.totalorder %s20, 0
    %p182 = por %p180, %p181
    %p183 = scmp.ne.s32.totalorder %s171, %s172
    %p184 = scmp.eq.s32.totalorder %s21, 1
    %p185 = por %p183, %p184
    %p187 = scmp.ne.s32.totalorder %s172, %s186
    %p188 = scmp.eq.s32.totalorder %s21, 0
    %p189 = por %p187, %p188
    %s191 = sadd.s32 %s190, 1
    %p194 = scmp.eq.s32.totalorder %s15, 1
    %p195 = scmp.ne.s32.totalorder %s190, %s192
    %p196 = scmp.eq.s32.totalorder %s15, 0
    %p197 = por %p195, %p196
    %p198 = scmp.ne.s32.totalorder %s190, %s192
    %p199 = scmp.eq.s32.totalorder %s20, 1
    %p200 = por %p198, %p199
    %p201 = scmp.ne.s32.totalorder %s192, %s193
    %p202 = scmp.eq.s32.totalorder %s20, 0
    %p203 = por %p201, %p202
    %p204 = scmp.ne.s32.totalorder %s192, %s193
    %p205 = scmp.eq.s32.totalorder %s21, 1
    %p206 = por %p204, %p205
    %p208 = scmp.ne.s32.totalorder %s193, %s207
    %p209 = scmp.eq.s32.totalorder %s21, 0
    %p210 = por %p208, %p209
    %s211 = ssub.s32 %s23, %s30
    %s212 = ssub.s32 %s22, %s34
    %s213 = sor.u32 %s211, %s212
    %p214 = scmp.eq.s32.totalorder %s213, 0
    %s216 = sadd.s32 %s215, 1
    %s217 = scalar_select %p214, %s215, %s216
    %p220 = pneg %p214
    %p221 = scmp.eq.s32.totalorder %s15, 1
    %p222 = por %p220, %p221
    %p223 = scmp.ne.s32.totalorder %s215, %s218
    %p224 = scmp.eq.s32.totalorder %s15, 0
    %p225 = por %p223, %p224
    %p226 = scmp.ne.s32.totalorder %s215, %s218
    %p227 = scmp.eq.s32.totalorder %s20, 1
    %p228 = por %p226, %p227
    %p229 = scmp.ne.s32.totalorder %s218, %s219
    %p230 = scmp.eq.s32.totalorder %s20, 0
    %p231 = por %p229, %p230
    %p232 = scmp.ne.s32.totalorder %s218, %s219
    %p233 = scmp.eq.s32.totalorder %s21, 1
    %p234 = por %p232, %p233
    %p236 = scmp.ne.s32.totalorder %s219, %s235
    %p237 = scmp.eq.s32.totalorder %s21, 0
    %p238 = por %p236, %p237
    %s239 = ssub.s32 %s23, %s30
    %s240 = ssub.s32 %s22, %s34
    %s241 = sor.u32 %s239, %s240
    %p242 = scmp.eq.s32.totalorder %s241, 0
    %s244 = sadd.s32 %s243, 1
    %s245 = scalar_select %p242, %s243, %s244
    %p248 = pneg %p242
    %p249 = scmp.eq.s32.totalorder %s15, 1
    %p250 = por %p248, %p249
    %p251 = scmp.ne.s32.totalorder %s243, %s246
    %p252 = scmp.eq.s32.totalorder %s15, 0
    %p253 = por %p251, %p252
    %p254 = scmp.ne.s32.totalorder %s243, %s246
    %p255 = scmp.eq.s32.totalorder %s20, 1
    %p256 = por %p254, %p255
    %p257 = scmp.ne.s32.totalorder %s246, %s247
    %p258 = scmp.eq.s32.totalorder %s20, 0
    %p259 = por %p257, %p258
    %p260 = scmp.ne.s32.totalorder %s246, %s247
    %p261 = scmp.eq.s32.totalorder %s21, 1
    %p262 = por %p260, %p261
    %p264 = scmp.ne.s32.totalorder %s247, %s263
    %p265 = scmp.eq.s32.totalorder %s21, 0
    %p266 = por %p264, %p265
    %p267 = scmp.le.s32.totalorder 1, %s15
    %p268 = scmp.lt.s32.totalorder %s15, 3
    %p269 = pnand %p267, %p268
    %p270 = pneg %p269
    // Predicated region
    $region9: #{tpu_custom_call.1} parent=5 // pred_check
      _
    $region10: #{tpu_custom_call.1} parent=5 // pred_check_branch
      %272 = sbr.rel (%p269) target = $region12
    $region11: #{tpu_custom_call.1} parent=5 // pred_region
      %s273 = ssub.s32 %s15, 1
      // Predicated region
      $region13: #{tpu_custom_call.1} parent=11 // pred_check
        %p274 = pneg %p53
      $region14: #{tpu_custom_call.1} parent=11 // pred_check_branch
        %276 = sbr.rel (%p274) target = $region16
      $region15: #{tpu_custom_call.1} parent=11 // pred_region
        %p277 = scmp.lt.s32.totalorder %s24, 0
        %s278 = scalar_select %p277, %s24, 0
        %s279 = smul.addr %s278, 8
        %s280 = scalar_lea.vmem %s0, %s279
      $region16: #{tpu_custom_call.1} parent=11 // pred_fallthru
        _
      // Predicated region
      $region17: #{tpu_custom_call.1} parent=11 // pred_check
        %p281 = pneg %p182
      $region18: #{tpu_custom_call.1} parent=11 // pred_check_branch
        %283 = sbr.rel (%p281) target = $region20
      $region19: #{tpu_custom_call.1} parent=11 // pred_region
        _
      $region20: #{tpu_custom_call.1} parent=11 // pred_fallthru
        _
      // Predicated region
      $region21: #{tpu_custom_call.1} parent=11 // pred_check
        %p284 = pneg %p203
      $region22: #{tpu_custom_call.1} parent=11 // pred_check_branch
        %286 = sbr.rel (%p284) target = $region24
      $region23: #{tpu_custom_call.1} parent=11 // pred_region
        _
      $region24: #{tpu_custom_call.1} parent=11 // pred_fallthru
        _
    $region12: #{tpu_custom_call.1} parent=5 // pred_fallthru
      _
    %p287 = scmp.lt.s32.totalorder %s15, 2
    // Predicated region
    $region25: #{tpu_custom_call.1} parent=5 // pred_check
      %p288 = pneg %p287
    $region26: #{tpu_custom_call.1} parent=5 // pred_check_branch
      %290 = sbr.rel (%p288) target = $region28
    $region27: #{tpu_custom_call.1} parent=5 // pred_region
      // Predicated region
      $region29: #{tpu_custom_call.1} parent=27 // pred_check
        %p291 = pneg %p73
      $region30: #{tpu_custom_call.1} parent=27 // pred_check_branch
        %293 = sbr.rel (%p291) target = $region32
      $region31: #{tpu_custom_call.1} parent=27 // pred_region
        %p294 = scmp.lt.s32.totalorder %s23, 1
        %s295 = scalar_select %p294, %s23, 1
        %s296 = scalar_lea.vmem %s1, %s295
      $region32: #{tpu_custom_call.1} parent=27 // pred_fallthru
        _
      // Predicated region
      $region33: #{tpu_custom_call.1} parent=27 // pred_check
        %p297 = pneg %p99
      $region34: #{tpu_custom_call.1} parent=27 // pred_check_branch
        %299 = sbr.rel (%p297) target = $region36
      $region35: #{tpu_custom_call.1} parent=27 // pred_region
        %p300 = scmp.lt.s32.totalorder %s23, 1
        %s301 = scalar_select %p300, %s23, 1
        %s302 = scalar_lea.vmem %s2, %s301
      $region36: #{tpu_custom_call.1} parent=27 // pred_fallthru
        _
      // Predicated region
      $region37: #{tpu_custom_call.1} parent=27 // pred_check
        %p303 = pneg %p127
      $region38: #{tpu_custom_call.1} parent=27 // pred_check_branch
        %305 = sbr.rel (%p303) target = $region40
      $region39: #{tpu_custom_call.1} parent=27 // pred_region
        %p306 = scmp.lt.s32.totalorder %s23, 1
        %s307 = scalar_select %p306, %s23, 1
        %p308 = scmp.lt.s32.totalorder %s22, 0
        %s309 = scalar_select %p308, %s22, 0
        %s310 = sadd.s32 %s309, %s307
        %s311 = smul.addr %s310, 4
        %s312 = scalar_lea.vmem %s3, %s311
      $region40: #{tpu_custom_call.1} parent=27 // pred_fallthru
        _
      // Predicated region
      $region41: #{tpu_custom_call.1} parent=27 // pred_check
        %p313 = pneg %p155
      $region42: #{tpu_custom_call.1} parent=27 // pred_check_branch
        %315 = sbr.rel (%p313) target = $region44
      $region43: #{tpu_custom_call.1} parent=27 // pred_region
        %p316 = scmp.lt.s32.totalorder %s23, 1
        %s317 = scalar_select %p316, %s23, 1
        %p318 = scmp.lt.s32.totalorder %s22, 0
        %s319 = scalar_select %p318, %s22, 0
        %s320 = sadd.s32 %s319, %s317
        %s321 = smul.addr %s320, 4
        %s322 = scalar_lea.vmem %s4, %s321
      $region44: #{tpu_custom_call.1} parent=27 // pred_fallthru
        _
    $region28: #{tpu_custom_call.1} parent=5 // pred_fallthru
      _
    %p323 = scmp.le.s32.totalorder 1, %s15
    %p324 = scmp.lt.s32.totalorder %s15, 3
    %p325 = pnand %p323, %p324
    %p326 = pneg %p325
    // Predicated region
    $region45: #{tpu_custom_call.1} parent=5 // pred_check
      _
    $region46: #{tpu_custom_call.1} parent=5 // pred_check_branch
      %328 = sbr.rel (%p325) target = $region48
    $region47: #{tpu_custom_call.1} parent=5 // pred_region
      %s329 = ssub.s32 %s15, 1
      %p330 = scmp.lt.s32.totalorder %s24, 0
      %s331 = scalar_select %p330, %s24, 0
      %s332 = smul.addr %s331, 8
      %s333 = scalar_lea.vmem %s0, %s332
      %p334 = pneg %p53
      %p335 = pneg %p50
      %p336 = scmp.lt.s32.totalorder %s25, 1
      %s337 = scalar_select %p336, %s25, 1
      %s338 = scalar_lea.vmem %s1, %s337
      %p339 = pneg %p79
      %p340 = pneg %p76
      %p341 = scmp.lt.s32.totalorder %s25, 1
      %s342 = scalar_select %p341, %s25, 1
      %s343 = scalar_lea.vmem %s2, %s342
      %p344 = pneg %p105
      %p345 = pneg %p102
      %p346 = scmp.lt.s32.totalorder %s25, 1
      %s347 = scalar_select %p346, %s25, 1
      %p348 = scmp.lt.s32.totalorder %s24, 0
      %s349 = scalar_select %p348, %s24, 0
      %s350 = sadd.s32 %s349, %s347
      %s351 = smul.addr %s350, 4
      %s352 = scalar_lea.vmem %s3, %s351
      %p353 = pneg %p133
      %p354 = pneg %p130
      %p355 = scmp.lt.s32.totalorder %s25, 1
      %s356 = scalar_select %p355, %s25, 1
      %p357 = scmp.lt.s32.totalorder %s24, 0
      %s358 = scalar_select %p357, %s24, 0
      %s359 = sadd.s32 %s358, %s356
      %s360 = smul.addr %s359, 4
      %s361 = scalar_lea.vmem %s4, %s360
      %p362 = pneg %p161
      %p363 = pneg %p158
      %p364 = pneg %p182
      %p365 = pneg %p179
      %p366 = pneg %p203
      %p367 = pneg %p200
      %p368 = pneg %p231
      %p369 = pneg %p228
      %p370 = scmp.lt.s32.totalorder %s25, 1
      %s371 = scalar_select %p370, %s25, 1
      %p372 = scmp.lt.s32.totalorder %s24, 0
      %s373 = scalar_select %p372, %s24, 0
      %s374 = sadd.s32 %s373, %s371
      %s375 = smul.addr %s374, 8
      %s376 = scalar_lea.vmem %s7, %s375
      %p377 = pneg %p259
      %p378 = pneg %p256
      %p379 = scmp.lt.s32.totalorder %s25, 1
      %s380 = scalar_select %p379, %s25, 1
      %p381 = scmp.lt.s32.totalorder %s24, 0
      %s382 = scalar_select %p381, %s24, 0
      %s383 = sadd.s32 %s382, %s380
      %s384 = smul.addr %s383, 8
      %s385 = scalar_lea.vmem %s8, %s384
      %p386 = scmp.lt.s32.totalorder %s24, 0
      %s387 = scalar_select %p386, %s24, 0
      %s388 = smul.addr %s387, 8
      %s389 = scalar_lea.vmem %s0, %s388
      %p390 = scmp.lt.s32.totalorder %s25, 1
      %s391 = scalar_select %p390, %s25, 1
      %s392 = scalar_lea.vmem %s1, %s391
      %p393 = scmp.lt.s32.totalorder %s25, 1
      %s394 = scalar_select %p393, %s25, 1
      %s395 = scalar_lea.vmem %s2, %s394
      %p396 = scmp.lt.s32.totalorder %s25, 1
      %s397 = scalar_select %p396, %s25, 1
      %p398 = scmp.lt.s32.totalorder %s24, 0
      %s399 = scalar_select %p398, %s24, 0
      %s400 = sadd.s32 %s399, %s397
      %s401 = smul.addr %s400, 4
      %s402 = scalar_lea.vmem %s3, %s401
      %p403 = scmp.lt.s32.totalorder %s25, 1
      %s404 = scalar_select %p403, %s25, 1
      %p405 = scmp.lt.s32.totalorder %s24, 0
      %s406 = scalar_select %p405, %s24, 0
      %s407 = sadd.s32 %s406, %s404
      %s408 = smul.addr %s407, 4
      %s409 = scalar_lea.vmem %s4, %s408
      %p410 = scmp.lt.s32.totalorder %s25, 1
      %s411 = scalar_select %p410, %s25, 1
      %p412 = scmp.lt.s32.totalorder %s24, 0
      %s413 = scalar_select %p412, %s24, 0
      %s414 = sadd.s32 %s413, %s411
      %s415 = smul.addr %s414, 8
      %s416 = scalar_lea.vmem %s7, %s415
      %p417 = scmp.lt.s32.totalorder %s25, 1
      %s418 = scalar_select %p417, %s25, 1
      %p419 = scmp.lt.s32.totalorder %s24, 0
      %s420 = scalar_select %p419, %s24, 0
      %s421 = sadd.s32 %s420, %s418
      %s422 = smul.addr %s421, 8
      %s423 = scalar_lea.vmem %s8, %s422
      %v424 = vld [vmem:[%s5] sm:$0xff]
      %v425 = vld [vmem:[%s5 + $0x8] sm:$0xff]
      %v426 = vld [vmem:[%s5 + $0x10] sm:$0xff]
      %v427 = vld [vmem:[%s5 + $0x18] sm:$0xff]
      %v428 = vld [vmem:[%s6] sm:$0x1]
      %v429 = vld [vmem:[%s389] sm:$0xff]
      %v430 = vld [vmem:[%s392] sm:$0x1]
      %v431 = vunpack.c.l.bf16 %v430
      %v432 = vlaneseq
      %v433 = vshrl.u32 %v432, 7
      %v434 = vsub.s32 0, %v433
      %v435 = vrot.slane %v431, %v434
      %v436 = vmul.f32 %v429, %v435
      %v437 = vld [vmem:[%s402] sm:$0xf]
      %v438 = vunpack.c.l.bf16 %v437
      %s439 = scalar_lea.vmem %s389, 8
      %v440 = vld [vmem:[%s439] sm:$0xff]
      %v441 = vld [vmem:[%s395] sm:$0x1]
      %v442 = vunpack.c.l.bf16 %v441
      %v443 = vlaneseq
      %v444 = vshrl.u32 %v443, 7
      %v445 = vsub.s32 0, %v444
      %v446 = vrot.slane %v442, %v445
      %v447 = vmul.f32 %v440, %v446
      %v448 = vadd.f32 %v436, %v447
      %v449 = vld [vmem:[%s409] sm:$0xf]
      %v450 = vunpack.c.l.bf16 %v449
      %v451 = vadd.f32 %v438, %v450
      %v453 = vlaneseq
      %v454 = vshrl.u32 %v453, 7
      %v455 = vsub.s32 0, %v454
      %v456 = vrot.slane %v428, %v455
      %vm458 = vcmask 261120
      %v460 = vsel %vm458, %v448, 0
      %462 = vmatprep.subr.mxu0 0.0
      %463 = vmatpush1.msra.mxu0 %v424
      %464 = vmatprep.subr.mxu0 0.0
      %465 = vmatpush1.msra.mxu0 %v425
      %466 = vmatprep.subr.mxu0 0.0
      %467 = vmatpush1.msra.mxu0 %v426
      %468 = vmatprep.subr.mxu0 0.0
      %469 = vmatpush1.msra.mxu0 %v427
      %470 = vmatprep.subr.mxu0 0.0
      %471 = vmatpush1.msra.mxu0 0.0
      %472 = vmatprep.subr.mxu0 0.0
      %473 = vmatpush1.msra.mxu0 0.0
      %474 = vmatprep.subr.mxu0 0.0
      %475 = vmatpush1.msra.mxu0 0.0
      %476 = vmatprep.subr.mxu0 0.0
      %477 = vmatpush1.msra.mxu0 0.0
      %478 = vmatprep.subr.mxu0 0.0
      %479 = vmatpush1.msra.mxu0 0.0
      %480 = vmatprep.subr.mxu0 0.0
      %481 = vmatpush1.msra.mxu0 0.0
      %482 = vmatprep.subr.mxu0 0.0
      %483 = vmatpush1.msra.mxu0 0.0
      %484 = vmatprep.subr.mxu0 0.0
      %485 = vmatpush1.msra.mxu0 0.0
      %486 = vmatprep.subr.mxu0 0.0
      %487 = vmatpush1.msra.mxu0 0.0
      %488 = vmatprep.subr.mxu0 0.0
      %489 = vmatpush1.msra.mxu0 0.0
      %490 = vmatprep.subr.mxu0 0.0
      %491 = vmatpush1.msra.mxu0 0.0
      %492 = vmatprep.subr.mxu0 0.0
      %493 = vmatpush1.msra.mxu0 0.0
      %494 = vmatprep.subr.mxu0 0.0
      %495 = vmatpush1.msra.mxu0 0.0
      %496 = vmatprep.subr.mxu0 0.0
      %497 = vmatpush1.msra.mxu0 0.0
      %498 = vmatprep.subr.mxu0 0.0
      %499 = vmatpush1.msra.mxu0 0.0
      %500 = vmatprep.subr.mxu0 0.0
      %501 = vmatpush1.msra.mxu0 0.0
      %502 = vmatprep.subr.mxu0 0.0
      %503 = vmatpush1.msra.mxu0 0.0
      %504 = vmatprep.subr.mxu0 0.0
      %505 = vmatpush1.msra.mxu0 0.0
      %506 = vmatprep.subr.mxu0 0.0
      %507 = vmatpush1.msra.mxu0 0.0
      %508 = vmatprep.subr.mxu0 0.0
      %509 = vmatpush1.msra.mxu0 0.0
      %510 = vmatprep.subr.mxu0 0.0
      %511 = vmatpush1.msra.mxu0 0.0
      %512 = vmatprep.subr.mxu0 0.0
      %513 = vmatpush1.msra.mxu0 0.0
      %514 = vmatprep.subr.mxu0 0.0
      %515 = vmatpush1.msra.mxu0 0.0
      %516 = vmatprep.subr.mxu0 0.0
      %517 = vmatpush1.msra.mxu0 0.0
      %518 = vmatprep.subr.mxu0 0.0
      %519 = vmatpush1.msra.mxu0 0.0
      %520 = vmatprep.subr.mxu0 0.0
      %521 = vmatpush1.msra.mxu0 0.0
      %522 = vmatprep.subr.mxu0 0.0
      %523 = vmatpush1.msra.mxu0 0.0
      %524 = vmatprep.subr.mxu0 0.0
      %525 = vmatpush1.msra.mxu0 0.0
      %526 = vmatprep.mubr.f32.mxu0 0.0
      %527 = vmatmul.mubr.f32.gmra.mrb[0].mxu0 %v460
      %v528 = vpop.f32.mrb[0].mxu0
      %v529 = vadd.f32 %v456, %v528
      %v530 = vpop.f32.mrb[0].mxu0
      %531 = vdwg.mxu0
      %v533 = vsel %vm458, %v451, 0
      %535 = vmatprep.subr.mxu0 0.0
      %536 = vmatpush1.msra.mxu0 %v424
      %537 = vmatprep.subr.mxu0 0.0
      %538 = vmatpush1.msra.mxu0 %v425
      %539 = vmatprep.subr.mxu0 0.0
      %540 = vmatpush1.msra.mxu0 %v426
      %541 = vmatprep.subr.mxu0 0.0
      %542 = vmatpush1.msra.mxu0 %v427
      %543 = vmatprep.subr.mxu0 0.0
      %544 = vmatpush1.msra.mxu0 0.0
      %545 = vmatprep.subr.mxu0 0.0
      %546 = vmatpush1.msra.mxu0 0.0
      %547 = vmatprep.subr.mxu0 0.0
      %548 = vmatpush1.msra.mxu0 0.0
      %549 = vmatprep.subr.mxu0 0.0
      %550 = vmatpush1.msra.mxu0 0.0
      %551 = vmatprep.subr.mxu0 0.0
      %552 = vmatpush1.msra.mxu0 0.0
      %553 = vmatprep.subr.mxu0 0.0
      %554 = vmatpush1.msra.mxu0 0.0
      %555 = vmatprep.subr.mxu0 0.0
      %556 = vmatpush1.msra.mxu0 0.0
      %557 = vmatprep.subr.mxu0 0.0
      %558 = vmatpush1.msra.mxu0 0.0
      %559 = vmatprep.subr.mxu0 0.0
      %560 = vmatpush1.msra.mxu0 0.0
      %561 = vmatprep.subr.mxu0 0.0
      %562 = vmatpush1.msra.mxu0 0.0
      %563 = vmatprep.subr.mxu0 0.0
      %564 = vmatpush1.msra.mxu0 0.0
      %565 = vmatprep.subr.mxu0 0.0
      %566 = vmatpush1.msra.mxu0 0.0
      %567 = vmatprep.subr.mxu0 0.0
      %568 = vmatpush1.msra.mxu0 0.0
      %569 = vmatprep.subr.mxu0 0.0
      %570 = vmatpush1.msra.mxu0 0.0
      %571 = vmatprep.subr.mxu0 0.0
      %572 = vmatpush1.msra.mxu0 0.0
      %573 = vmatprep.subr.mxu0 0.0
      %574 = vmatpush1.msra.mxu0 0.0
      %575 = vmatprep.subr.mxu0 0.0
      %576 = vmatpush1.msra.mxu0 0.0
      %577 = vmatprep.subr.mxu0 0.0
      %578 = vmatpush1.msra.mxu0 0.0
      %579 = vmatprep.subr.mxu0 0.0
      %580 = vmatpush1.msra.mxu0 0.0
      %581 = vmatprep.subr.mxu0 0.0
      %582 = vmatpush1.msra.mxu0 0.0
      %583 = vmatprep.subr.mxu0 0.0
      %584 = vmatpush1.msra.mxu0 0.0
      %585 = vmatprep.subr.mxu0 0.0
      %586 = vmatpush1.msra.mxu0 0.0
      %587 = vmatprep.subr.mxu0 0.0
      %588 = vmatpush1.msra.mxu0 0.0
      %589 = vmatprep.subr.mxu0 0.0
      %590 = vmatpush1.msra.mxu0 0.0
      %591 = vmatprep.subr.mxu0 0.0
      %592 = vmatpush1.msra.mxu0 0.0
      %593 = vmatprep.subr.mxu0 0.0
      %594 = vmatpush1.msra.mxu0 0.0
      %595 = vmatprep.subr.mxu0 0.0
      %596 = vmatpush1.msra.mxu0 0.0
      %597 = vmatprep.subr.mxu0 0.0
      %598 = vmatpush1.msra.mxu0 0.0
      %599 = vmatprep.mubr.f32.mxu0 0.0
      %600 = vmatmul.mubr.f32.gmra.mrb[0].mxu0 %v533
      %v601 = vpop.f32.mrb[0].mxu0
      %v602 = vadd.f32 %v456, %v601
      %v603 = vpop.f32.mrb[0].mxu0
      %604 = vdwg.mxu0
      %vm605 = vcmask 31744
      %606 = vst.msk [vmem:[%s416] sm:$0xff] %vm605, %v529
      %607 = vst.msk [vmem:[%s423] sm:$0xff] %vm605, %v602
      %p608 = scmp.lt.s32.totalorder %s25, 1
      %s609 = scalar_select %p608, %s25, 1
      %p610 = scmp.lt.s32.totalorder %s24, 0
      %s611 = scalar_select %p610, %s24, 0
      %s612 = sadd.s32 %s611, %s609
      %s613 = smul.addr %s612, 8
      %s614 = scalar_lea.vmem %s7, %s613
      %p615 = scmp.lt.s32.totalorder %s25, 1
      %s616 = scalar_select %p615, %s25, 1
      %p617 = scmp.lt.s32.totalorder %s24, 0
      %s618 = scalar_select %p617, %s24, 0
      %s619 = sadd.s32 %s618, %s616
      %s620 = smul.addr %s619, 8
      %s621 = scalar_lea.vmem %s8, %s620
      // Predicated region
      $region49: #{tpu_custom_call.1} parent=47 // pred_check
        %p622 = pneg %p228
      $region50: #{tpu_custom_call.1} parent=47 // pred_check_branch
        %624 = sbr.rel (%p622) target = $region52
      $region51: #{tpu_custom_call.1} parent=47 // pred_region
        _
      $region52: #{tpu_custom_call.1} parent=47 // pred_fallthru
        _
      // Predicated region
      $region53: #{tpu_custom_call.1} parent=47 // pred_check
        %p625 = pneg %p256
      $region54: #{tpu_custom_call.1} parent=47 // pred_check_branch
        %627 = sbr.rel (%p625) target = $region56
      $region55: #{tpu_custom_call.1} parent=47 // pred_region
        _
      $region56: #{tpu_custom_call.1} parent=47 // pred_fallthru
        _
    $region48: #{tpu_custom_call.1} parent=5 // pred_fallthru
      _
    %p628 = scmp.le.s32.totalorder 2, %s15
    // Predicated region
    $region57: #{tpu_custom_call.1} parent=5 // pred_check
      %p629 = pneg %p628
    $region58: #{tpu_custom_call.1} parent=5 // pred_check_branch
      %631 = sbr.rel (%p629) target = $region60
    $region59: #{tpu_custom_call.1} parent=5 // pred_region
      %s632 = ssub.s32 %s15, 2
      // Predicated region
      $region61: #{tpu_custom_call.1} parent=59 // pred_check
        %p633 = pneg %p234
      $region62: #{tpu_custom_call.1} parent=59 // pred_check_branch
        %635 = sbr.rel (%p633) target = $region64
      $region63: #{tpu_custom_call.1} parent=59 // pred_region
        %p636 = scmp.lt.s32.totalorder %s27, 1
        %s637 = scalar_select %p636, %s27, 1
        %p638 = scmp.lt.s32.totalorder %s26, 0
        %s639 = scalar_select %p638, %s26, 0
        %s640 = sadd.s32 %s639, %s637
        %s641 = smul.addr %s640, 8
        %s642 = scalar_lea.vmem %s7, %s641
      $region64: #{tpu_custom_call.1} parent=59 // pred_fallthru
        _
      // Predicated region
      $region65: #{tpu_custom_call.1} parent=59 // pred_check
        %p643 = pneg %p262
      $region66: #{tpu_custom_call.1} parent=59 // pred_check_branch
        %645 = sbr.rel (%p643) target = $region68
      $region67: #{tpu_custom_call.1} parent=59 // pred_region
        %p646 = scmp.lt.s32.totalorder %s27, 1
        %s647 = scalar_select %p646, %s27, 1
        %p648 = scmp.lt.s32.totalorder %s26, 0
        %s649 = scalar_select %p648, %s26, 0
        %s650 = sadd.s32 %s649, %s647
        %s651 = smul.addr %s650, 8
        %s652 = scalar_lea.vmem %s8, %s651
      $region68: #{tpu_custom_call.1} parent=59 // pred_fallthru
        _
    $region60: #{tpu_custom_call.1} parent=5 // pred_fallthru
      _
  $region6: #{tpu_custom_call.1} parent=0 // loop_footer
    %s19 = sadd.s32 1, %s15
  $region7: #{tpu_custom_call.1} parent=0 // loop_footer_branch
    %14 = sbr.rel target = $region3
  $region8: #{tpu_custom_call.1} parent=0 // loop_exit
    _

</llo_original>
